<compile_context>
chip_gen: v6e
topology: v6e:2x2x1
jax: 0.10.0
libtpu: 0.0.40
codegen_flags: <defaults>
</compile_context>

<pallas_src>
import jax
import jax.numpy as jnp
from jax.experimental import pallas as pl
from jax.experimental.pallas import tpu as pltpu

FILTER_SIZES = (3, 4, 5)
MAX_FS = max(FILTER_SIZES)


def cnn_kernel(emb_ref, wall_ref, bcat_ref, mask_ref, fcw_ref, fcb_ref, out_ref):
    TB, L, E = emb_ref.shape
    n_pad = wall_ref.shape[1]
    nf3 = bcat_ref.shape[1]                     # len(FILTER_SIZES) * num_filters

    # One lane-dense MXU matmul for the whole conv bank (bf16 in, f32 acc).
    # L is padded to a multiple of 16 in the wrapper, so both reshapes are
    # layout-preserving (no VMEM repack).
    emb2d = emb_ref[...].reshape(TB * L, E)
    scores = jnp.dot(emb2d, wall_ref[...],
                     preferred_element_type=jnp.float32)          # [TB*L, Npad]
    scores = scores.reshape(TB, L, n_pad)

    # conv[b, t, c] = sum_i scores[b, t + i, i*nf3 + c]  (shift-major packing;
    # zero weight columns make every shift block exactly nf3 wide).
    # Slice the nf3-wide block BEFORE rolling so the XLU only rotates nf3 lanes.
    acc = scores[:, :, 0:nf3]
    for i in range(1, MAX_FS):
        acc = acc + pltpu.roll(scores[:, :, i * nf3:(i + 1) * nf3],
                               shift=L - i, axis=1)   # rolled[t] = blk[t + i]

    # Mask wrapped / out-of-range / padded time steps (additive -1e30, kept in
    # f32 on purpose), then max over time, bias, ReLU.  relu(max_t(x)+b) ==
    # max_t(relu(x+b)) since relu is monotone and the bias is constant over t.
    acc = acc + mask_ref[...][None, :, :]
    pooled = jnp.max(acc, axis=1)                                 # [TB, nf3]
    pooled = jnp.maximum(pooled + bcat_ref[...], 0.0)

    # Dropout is identity at inference time.  FC matmul bf16 -> f32 acc into a
    # lane-dense (128-class-padded) output tile.
    logits = jnp.dot(pooled.astype(fcw_ref.dtype), fcw_ref[...],
                     preferred_element_type=jnp.float32) + fcb_ref[...]
    out_ref[...] = logits.astype(out_ref.dtype)


def _pack_weights(params, seq_len, seq_len_pad, num_classes_pad):
    """Pack conv/fc params into the lane-dense layout the kernel expects."""
    embed_dim = params["embedding"].shape[1]
    num_classes = params["fc_b"].shape[0]
    nf = params["conv_w"][0].shape[0]
    nf3 = len(FILTER_SIZES) * nf
    n_cols = MAX_FS * nf3
    n_pad = max(128, ((n_cols + 127) // 128) * 128)               # lane padding

    w_all = jnp.zeros((embed_dim, n_pad), jnp.float32)
    for i in range(MAX_FS):
        for g, fs in enumerate(FILTER_SIZES):
            if i < fs:
                col = i * nf3 + g * nf
                w_all = w_all.at[:, col:col + nf].set(params["conv_w"][g][:, i, :].T)
    w_all = w_all.astype(jnp.bfloat16)

    b_cat = jnp.concatenate(params["conv_b"]).reshape(1, nf3).astype(jnp.float32)

    # Additive validity mask (f32; -1e30 would overflow bf16): time step t is
    # valid for filter fs iff t < seq_len - fs + 1.  Padded rows (t >= seq_len)
    # are automatically invalid.
    t_idx = jnp.arange(seq_len_pad, dtype=jnp.int32)[:, None]     # [Lp, 1]
    t_lim = jnp.repeat(
        jnp.array([seq_len - fs + 1 for fs in FILTER_SIZES], dtype=jnp.int32),
        nf)[None, :]                                               # [1, nf3]
    mask_add = jnp.where(t_idx < t_lim, 0.0, -1e30).astype(jnp.float32)

    # Lane-dense (class-padded) fc weight/bias; weight bf16, bias f32.
    fc_wt = jnp.zeros((nf3, num_classes_pad), jnp.float32)
    fc_wt = fc_wt.at[:, :num_classes].set(params["fc_w"].T)
    fc_wt = fc_wt.astype(jnp.bfloat16)
    fc_b = jnp.zeros((1, num_classes_pad), jnp.float32)
    fc_b = fc_b.at[0, :num_classes].set(params["fc_b"])
    return w_all, b_cat, mask_add, fc_wt, fc_b


def _vmem_capacity_bytes():
    """Per-TensorCore VMEM capacity; conservative (v7x) fallback."""
    try:
        return int(pltpu.get_tpu_info().vmem_capacity_bytes)
    except Exception:
        return 64 * 1024 * 1024


def _pick_batch_tile(batch, seq_len_pad, embed_dim, n_pad, nf3, budget_bytes):
    """Batch tile sized so double-buffered bf16 activations + f32 conv-bank
    temporaries stay within the per-generation VMEM budget, with enough grid
    steps for megacore sharding / pipelining when the batch allows it."""
    per_row = (4 * seq_len_pad * embed_dim      # 2x double-buffered bf16 emb
               + 4 * seq_len_pad * n_pad        # f32 conv-bank scores
               + 8 * seq_len_pad * nf3)         # f32 acc + rolled slice
    cap = budget_bytes // max(per_row, 1)
    cap = max(8, min(2048, (cap // 8) * 8))     # keep the output tile 8-aligned
    # Keep >= 4 grid steps for large batches so v7x's two TensorCores (via
    # dimension_semantics=("parallel",)) and the DMA pipeliner both get work.
    split = pl.cdiv(batch, 4)
    if split >= 8:
        cap = min(cap, max(8, (split // 8) * 8))
    # TODO(synk): for very long sequences add a second grid axis over L with a
    # running-max VMEM accumulator so the tb>=8 floor can never exceed VMEM.
    tb = batch if batch <= cap else cap
    return tb, per_row


def cnn_classifier_forward(input_ids, attention_mask, params):
    # attention_mask accepted for API parity; the PyTorch forward ignores it too.
    del attention_mask
    batch, seq_len = input_ids.shape
    if seq_len < MAX_FS:
        raise ValueError(f"seq_len={seq_len} must be >= max filter size {MAX_FS}")

    embed_dim = params["embedding"].shape[1]
    num_filters = params["conv_w"][0].shape[0]
    num_classes = params["fc_b"].shape[0]
    nf3 = len(FILTER_SIZES) * num_filters
    nc_pad = max(128, ((num_classes + 127) // 128) * 128)   # lane-dense output

    # Embedding lookup is glue (gather) outside the kernel; keep activations bf16.
    embedded = jnp.take(params["embedding"], input_ids, axis=0).astype(jnp.bfloat16)

    # Pad L to a multiple of 16 (bf16 sublane packing; also covers f32's 8) so
    # the in-kernel (TB, L) collapse is layout-preserving.
    seq_len_pad = ((seq_len + 15) // 16) * 16
    if seq_len_pad != seq_len:
        embedded = jnp.pad(embedded,
                           ((0, 0), (0, seq_len_pad - seq_len), (0, 0)))

    w_all, b_cat, mask_add, fc_wt, fc_b = _pack_weights(
        params, seq_len, seq_len_pad, nc_pad)
    n_pad = w_all.shape[1]

    vmem_cap = _vmem_capacity_bytes()
    budget = int(vmem_cap * 0.35)               # ~22 MiB on v7x, ~45 MiB on v6e
    tb, per_row = _pick_batch_tile(batch, seq_len_pad, embed_dim, n_pad, nf3,
                                   budget)
    live_est = per_row * tb + (4 << 20)         # tile live set + constants
    vmem_limit = int(min(max(int(vmem_cap * 0.75), live_est + (8 << 20)),
                         vmem_cap - (4 << 20)))

    b_pad = pl.cdiv(batch, tb) * tb
    if b_pad != batch:
        embedded = jnp.pad(embedded, ((0, b_pad - batch), (0, 0), (0, 0)))

    def _const_spec(shape):
        return pl.BlockSpec(shape, lambda i, _n=len(shape): (0,) * _n)

    out = pl.pallas_call(
        cnn_kernel,
        out_shape=jax.ShapeDtypeStruct((b_pad, nc_pad), jnp.float32),
        grid=(b_pad // tb,),
        in_specs=[
            pl.BlockSpec((tb, seq_len_pad, embed_dim), lambda i: (i, 0, 0)),
            _const_spec((embed_dim, n_pad)),
            _const_spec((1, nf3)),
            _const_spec((seq_len_pad, nf3)),
            _const_spec((nf3, nc_pad)),
            _const_spec((1, nc_pad)),
        ],
        out_specs=pl.BlockSpec((tb, nc_pad), lambda i: (i, 0)),
        compiler_params=pltpu.CompilerParams(
            dimension_semantics=("parallel",),
            vmem_limit_bytes=vmem_limit,
        ),
    )(embedded, w_all, b_cat, mask_add, fc_wt, fc_b)
    return out[:batch, :num_classes]


def init_params(key, vocab_size, embedding_dim, num_filters, num_classes):
    ks = jax.random.split(key, 3 + 2 * len(FILTER_SIZES))
    params = {
        "embedding": jax.random.normal(ks[0], (vocab_size, embedding_dim),
                                       jnp.float32),
        "conv_w": [],
        "conv_b": [],
    }
    for idx, fs in enumerate(FILTER_SIZES):
        params["conv_w"].append(
            0.1 * jax.random.normal(ks[1 + 2 * idx],
                                    (num_filters, fs, embedding_dim),
                                    jnp.float32))
        params["conv_b"].append(
            0.1 * jax.random.normal(ks[2 + 2 * idx], (num_filters,),
                                    jnp.float32))
    params["fc_w"] = 0.1 * jax.random.normal(
        ks[-2], (num_classes, len(FILTER_SIZES) * num_filters), jnp.float32)
    params["fc_b"] = 0.1 * jax.random.normal(ks[-1], (num_classes,),
                                             jnp.float32)
    return params


def _reference_forward(input_ids, params):
    """Pure-JAX f32 reference matching the PyTorch module (eval mode)."""
    emb = jnp.take(params["embedding"], input_ids, axis=0)        # [B, L, E]
    pooled = []
    for g, fs in enumerate(FILTER_SIZES):
        w = params["conv_w"][g]                                   # [nf, fs, E]
        b = params["conv_b"][g]
        t_out = emb.shape[1] - fs + 1
        conv = jnp.stack(
            [jnp.einsum("ble,fle->bf", emb[:, t:t + fs, :], w) for t in range(t_out)],
            axis=1) + b[None, None, :]
        pooled.append(jnp.max(jax.nn.relu(conv), axis=1))
    cat = jnp.concatenate(pooled, axis=-1)
    return cat @ params["fc_w"].T + params["fc_b"][None, :]


if __name__ == "__main__":
    # Small, forward-consistent shapes.
    vocab_size = 50
    embedding_dim = 32
    num_filters = 16
    num_classes = 2
    batch = 2
    seq_len = 8   # must be >= max(FILTER_SIZES)

    key = jax.random.PRNGKey(0)
    k_param, k_ids = jax.random.split(key)
    params = init_params(k_param, vocab_size, embedding_dim, num_filters,
                         num_classes)

    input_ids = jax.random.randint(k_ids, (batch, seq_len), 0, vocab_size,
                                   dtype=jnp.int32)
    attention_mask = jnp.ones((batch, seq_len), dtype=jnp.int32)

    logits = cnn_classifier_forward(input_ids, attention_mask, params)
    jax.block_until_ready(logits)
    assert logits.shape == (batch, num_classes)

    ref = _reference_forward(input_ids, params)
    assert bool(jnp.allclose(logits, ref, atol=1e-1, rtol=1e-1)), (
        f"mismatch: kernel={logits} ref={ref}")

    print("KERNEL_OK")
</pallas_src>

<mosaic_0001>
module attributes {stable_mosaic.version = 11 : i64} {
  func.func @cnn_kernel(%arg0: i32, %arg1: memref<2x16x32xbf16, #tpu.memory_space<vmem>>, %arg2: memref<32x256xbf16, #tpu.memory_space<vmem>>, %arg3: memref<1x48xf32, #tpu.memory_space<vmem>>, %arg4: memref<16x48xf32, #tpu.memory_space<vmem>>, %arg5: memref<48x128xbf16, #tpu.memory_space<vmem>>, %arg6: memref<1x128xf32, #tpu.memory_space<vmem>>, %arg7: memref<2x128xf32, #tpu.memory_space<vmem>>) attributes {dimension_semantics = [#tpu.dimension_semantics<parallel>], iteration_bounds = array<i64: 1>, scalar_prefetch = 0 : i64, scratch_operands = 0 : i64, tpu.core_type = #tpu.core_type<tc>, window_params = [{transform_indices = @transform_0, window_bounds = array<i64: 2, 16, 32>}, {pipeline_mode = #tpu.pipeline_mode<synchronous>, transform_indices = @transform_1, window_bounds = array<i64: 32, 256>}, {pipeline_mode = #tpu.pipeline_mode<synchronous>, transform_indices = @transform_2, window_bounds = array<i64: 1, 48>}, {pipeline_mode = #tpu.pipeline_mode<synchronous>, transform_indices = @transform_3, window_bounds = array<i64: 16, 48>}, {pipeline_mode = #tpu.pipeline_mode<synchronous>, transform_indices = @transform_4, window_bounds = array<i64: 48, 128>}, {pipeline_mode = #tpu.pipeline_mode<synchronous>, transform_indices = @transform_5, window_bounds = array<i64: 1, 128>}, {transform_indices = @transform_6, window_bounds = array<i64: 2, 128>}]} {
    %c0 = arith.constant 0 : index
    %c0_0 = arith.constant 0 : index
    %c0_1 = arith.constant 0 : index
    %0 = vector.load %arg1[%c0, %c0_0, %c0_1] : memref<2x16x32xbf16, #tpu.memory_space<vmem>>, vector<2x16x32xbf16>
    %1 = vector.shape_cast %0 : vector<2x16x32xbf16> to vector<32x32xbf16>
    %c0_2 = arith.constant 0 : index
    %c0_3 = arith.constant 0 : index
    %2 = vector.load %arg2[%c0_2, %c0_3] : memref<32x256xbf16, #tpu.memory_space<vmem>>, vector<32x256xbf16>
    %cst = arith.constant dense<0.000000e+00> : vector<32x256xf32>
    %3 = tpu.matmul %1, %2, %cst {dimension_numbers = #tpu.dot_dimension_numbers<[1], [0], [0], [1], [0, 0, 1, 1], [], []>} : vector<32x32xbf16>, vector<32x256xbf16>, vector<32x256xf32> -> vector<32x256xf32>
    %4 = vector.shape_cast %3 : vector<32x256xf32> to vector<2x16x256xf32>
    %5 = vector.extract_strided_slice %4 {offsets = [0, 0, 0], sizes = [2, 16, 48], strides = [1, 1, 1]} : vector<2x16x256xf32> to vector<2x16x48xf32>
    %6 = vector.extract_strided_slice %4 {offsets = [0, 0, 48], sizes = [2, 16, 48], strides = [1, 1, 1]} : vector<2x16x256xf32> to vector<2x16x48xf32>
    %c15_i32 = arith.constant 15 : i32
    %7 = tpu.dynamic_rotate %6 by %c15_i32 dim 1 : vector<2x16x48xf32>, i32 -> vector<2x16x48xf32>
    %8 = arith.addf %5, %7 : vector<2x16x48xf32>
    %9 = vector.extract_strided_slice %4 {offsets = [0, 0, 96], sizes = [2, 16, 48], strides = [1, 1, 1]} : vector<2x16x256xf32> to vector<2x16x48xf32>
    %c14_i32 = arith.constant 14 : i32
    %10 = tpu.dynamic_rotate %9 by %c14_i32 dim 1 : vector<2x16x48xf32>, i32 -> vector<2x16x48xf32>
    %11 = arith.addf %8, %10 : vector<2x16x48xf32>
    %12 = vector.extract_strided_slice %4 {offsets = [0, 0, 144], sizes = [2, 16, 48], strides = [1, 1, 1]} : vector<2x16x256xf32> to vector<2x16x48xf32>
    %c13_i32 = arith.constant 13 : i32
    %13 = tpu.dynamic_rotate %12 by %c13_i32 dim 1 : vector<2x16x48xf32>, i32 -> vector<2x16x48xf32>
    %14 = arith.addf %11, %13 : vector<2x16x48xf32>
    %15 = vector.extract_strided_slice %4 {offsets = [0, 0, 192], sizes = [2, 16, 48], strides = [1, 1, 1]} : vector<2x16x256xf32> to vector<2x16x48xf32>
    %c12_i32 = arith.constant 12 : i32
    %16 = tpu.dynamic_rotate %15 by %c12_i32 dim 1 : vector<2x16x48xf32>, i32 -> vector<2x16x48xf32>
    %17 = arith.addf %14, %16 : vector<2x16x48xf32>
    %c0_4 = arith.constant 0 : index
    %c0_5 = arith.constant 0 : index
    %18 = vector.load %arg4[%c0_4, %c0_5] : memref<16x48xf32, #tpu.memory_space<vmem>>, vector<16x48xf32>
    %19 = vector.shape_cast %18 : vector<16x48xf32> to vector<1x16x48xf32>
    %20 = vector.broadcast %19 : vector<1x16x48xf32> to vector<2x16x48xf32>
    %21 = arith.addf %17, %20 : vector<2x16x48xf32>
    %cst_6 = arith.constant dense<0xFF800000> : vector<2x48xf32>
    %22 = vector.multi_reduction <maximumf>, %21, %cst_6 [1] : vector<2x16x48xf32> to vector<2x48xf32>
    %c0_7 = arith.constant 0 : index
    %c0_8 = arith.constant 0 : index
    %23 = vector.load %arg3[%c0_7, %c0_8] : memref<1x48xf32, #tpu.memory_space<vmem>>, vector<1x48xf32>
    %24 = vector.broadcast %23 : vector<1x48xf32> to vector<2x48xf32>
    %25 = arith.addf %22, %24 : vector<2x48xf32>
    %cst_9 = arith.constant 0.000000e+00 : f32
    %26 = vector.broadcast %cst_9 : f32 to vector<2x48xf32>
    %27 = arith.maximumf %25, %26 : vector<2x48xf32>
    %28 = arith.truncf %27 : vector<2x48xf32> to vector<2x48xbf16>
    %c0_10 = arith.constant 0 : index
    %c0_11 = arith.constant 0 : index
    %29 = vector.load %arg5[%c0_10, %c0_11] : memref<48x128xbf16, #tpu.memory_space<vmem>>, vector<48x128xbf16>
    %cst_12 = arith.constant dense<0.000000e+00> : vector<2x128xf32>
    %30 = tpu.matmul %28, %29, %cst_12 {dimension_numbers = #tpu.dot_dimension_numbers<[1], [0], [0], [1], [0, 0, 1, 1], [], []>} : vector<2x48xbf16>, vector<48x128xbf16>, vector<2x128xf32> -> vector<2x128xf32>
    %c0_13 = arith.constant 0 : index
    %c0_14 = arith.constant 0 : index
    %31 = vector.load %arg6[%c0_13, %c0_14] : memref<1x128xf32, #tpu.memory_space<vmem>>, vector<1x128xf32>
    %32 = vector.broadcast %31 : vector<1x128xf32> to vector<2x128xf32>
    %33 = arith.addf %30, %32 : vector<2x128xf32>
    %c0_15 = arith.constant 0 : index
    %c0_16 = arith.constant 0 : index
    %34 = vector.load %arg7[%c0_15, %c0_16] : memref<2x128xf32, #tpu.memory_space<vmem>>, vector<2x128xf32>
    tpu.vector_store %arg7[%c0_15, %c0_16], %33 {strides = array<i32>} : memref<2x128xf32, #tpu.memory_space<vmem>>, vector<2x128xf32>,
    return
  }
  func.func @transform_0(%arg0: i32) -> (i32, i32, i32) {
    %c0_i32 = arith.constant 0 : i32
    %c0_i32_0 = arith.constant 0 : i32
    %c0_i32_1 = arith.constant 0 : i32
    return %arg0, %c0_i32, %c0_i32_0 : i32, i32, i32
  }
  func.func @transform_1(%arg0: i32) -> (i32, i32) {
    %c0_i32 = arith.constant 0 : i32
    %c0_i32_0 = arith.constant 0 : i32
    %c0_i32_1 = arith.constant 0 : i32
    return %c0_i32, %c0_i32_0 : i32, i32
  }
  func.func @transform_2(%arg0: i32) -> (i32, i32) {
    %c0_i32 = arith.constant 0 : i32
    %c0_i32_0 = arith.constant 0 : i32
    %c0_i32_1 = arith.constant 0 : i32
    return %c0_i32, %c0_i32_0 : i32, i32
  }
  func.func @transform_3(%arg0: i32) -> (i32, i32) {
    %c0_i32 = arith.constant 0 : i32
    %c0_i32_0 = arith.constant 0 : i32
    %c0_i32_1 = arith.constant 0 : i32
    return %c0_i32, %c0_i32_0 : i32, i32
  }
  func.func @transform_4(%arg0: i32) -> (i32, i32) {
    %c0_i32 = arith.constant 0 : i32
    %c0_i32_0 = arith.constant 0 : i32
    %c0_i32_1 = arith.constant 0 : i32
    return %c0_i32, %c0_i32_0 : i32, i32
  }
  func.func @transform_5(%arg0: i32) -> (i32, i32) {
    %c0_i32 = arith.constant 0 : i32
    %c0_i32_0 = arith.constant 0 : i32
    %c0_i32_1 = arith.constant 0 : i32
    return %c0_i32, %c0_i32_0 : i32, i32
  }
  func.func @transform_6(%arg0: i32) -> (i32, i32) {
    %c0_i32 = arith.constant 0 : i32
    %c0_i32_0 = arith.constant 0 : i32
    return %arg0, %c0_i32 : i32, i32
  }
}

</mosaic_0001>

<llo_original>
// kernel: tpu_custom_call.1
$region0: #{tpu_custom_call.1}
  #allocation0 [shape = 'u32[]', space=smem, size = 0x4, offset = 0x4, fixed_abs, tag = 'smem constant byte address 0x4 - core index']
  #allocation1 [shape = 'u32[144,128]{1,0:T(1,128)}', space=vmem, size = 0x12000, scoped, tag = 'internal scratch']
  %s0 = inlined_call_operand.hbm [shape: bf16[2,16,32], index: 0, kind: input, shape index: {}]
  %s1 = inlined_call_operand.hbm [shape: bf16[32,256], index: 1, kind: input, shape index: {}]
  %s2 = inlined_call_operand.vmem [shape: f32[1,48], index: 2, kind: input, shape index: {}]
  %s3 = inlined_call_operand.hbm [shape: f32[16,48], index: 3, kind: input, shape index: {}]
  %s4 = inlined_call_operand.hbm [shape: bf16[48,128], index: 4, kind: input, shape index: {}]
  %s5 = inlined_call_operand.vmem [shape: f32[1,128], index: 5, kind: input, shape index: {}]
  %s6 = inlined_call_operand.hbm [shape: f32[2,128], index: 6, kind: output, shape index: {}]
  %s7 = sld [smem:[#allocation0]]
  $region50: #{tpu_custom_call.1} parent=0
    _
  %s9 = ssub.s32 1, %s7
  %s10 = scalar_select 0, %s9, %s7
  $region1: #{tpu_custom_call.1} parent=0
    #allocation2 [shape = 'u8[8192]{0}', space=vmem, size = 0x2000, scoped, tag = 'input window, operand 0, single buffered']
    #allocation3 [shape = 's32[1]{0}', space=sflag, size = 0x4, scoped, tag = 'scoped memory for tpu_custom_call.1']
    #allocation4 [shape = 's32[1]{0}', space=sflag, size = 0x4, scoped, tag = 'scoped memory for tpu_custom_call.1']
    #allocation5 [shape = 'u8[16384]{0}', space=vmem, size = 0x4000, scoped, tag = 'input window, operand 1, single buffered']
    #allocation6 [shape = 's32[1]{0}', space=sflag, size = 0x4, scoped, tag = 'scoped memory for tpu_custom_call.1']
    #allocation7 [shape = 'u8[8192]{0}', space=vmem, size = 0x2000, scoped, tag = 'input window, operand 3, single buffered']
    #allocation8 [shape = 'u8[12288]{0}', space=vmem, size = 0x3000, scoped, tag = 'input window, operand 4, single buffered']
    #allocation9 [shape = 's32[1]{0}', space=sflag, size = 0x4, scoped, tag = 'scoped memory for tpu_custom_call.1']
    #allocation10 [shape = 'u8[1024]{0}', space=vmem, size = 0x400, scoped, tag = 'output window, operand 0, single buffered']
    %11 = vsyncpa [#allocation3], 0
    %12 = vsyncpa [#allocation6], 0
    %13 = vsyncpa [#allocation9], 0
    %14 = vsyncpa [#allocation4], 0
    // Predicated region
    $region2: #{tpu_custom_call.1} parent=1 // pred_check
      _
    $region3: #{tpu_custom_call.1} parent=1 // pred_check_branch
      %16 = sbr.rel (0) target = $region5
    $region4: #{tpu_custom_call.1} parent=1 // pred_region
      %s18 = ssub.s32 256, 256
      %19 = vsyncadd [#allocation3], %s18
      %s20 = sshll.u32 [#allocation2], 4
      %s21 = int_to_ptr.vmem [resolvable:$true] %s20
      %26 = dma.hbm_to_vmem [thread:$0]  %s0, 256, %s21, [#allocation3], 64, 64, 4
    $region5: #{tpu_custom_call.1} parent=1 // pred_fallthru
      _
    // Predicated region
    $region6: #{tpu_custom_call.1} parent=1 // pred_check
      _
    $region7: #{tpu_custom_call.1} parent=1 // pred_check_branch
      %28 = sbr.rel (0) target = $region9
    $region8: #{tpu_custom_call.1} parent=1 // pred_region
      %s30 = ssub.s32 512, 512
      %31 = vsyncadd [#allocation6], %s30
      %s32 = sshll.u32 [#allocation5], 4
      %s33 = int_to_ptr.vmem [resolvable:$true] %s32
      %38 = dma.hbm_to_vmem [thread:$0]  %s1, 512, %s33, [#allocation6], 128, 128, 8
    $region9: #{tpu_custom_call.1} parent=1 // pred_fallthru
      _
    // Predicated region
    $region10: #{tpu_custom_call.1} parent=1 // pred_check
      _
    $region11: #{tpu_custom_call.1} parent=1 // pred_check_branch
      %40 = sbr.rel (0) target = $region13
    $region12: #{tpu_custom_call.1} parent=1 // pred_region
      _
    $region13: #{tpu_custom_call.1} parent=1 // pred_fallthru
      _
    // Predicated region
    $region14: #{tpu_custom_call.1} parent=1 // pred_check
      _
    $region15: #{tpu_custom_call.1} parent=1 // pred_check_branch
      %42 = sbr.rel (0) target = $region17
    $region16: #{tpu_custom_call.1} parent=1 // pred_region
      %s44 = ssub.s32 256, 256
      %45 = vsyncadd [#allocation6], %s44
      %s46 = sshll.u32 [#allocation7], 4
      %s47 = int_to_ptr.vmem [resolvable:$true] %s46
      %52 = dma.hbm_to_vmem [thread:$0]  %s3, 256, %s47, [#allocation6], 128, 128, 8
    $region17: #{tpu_custom_call.1} parent=1 // pred_fallthru
      _
    // Predicated region
    $region18: #{tpu_custom_call.1} parent=1 // pred_check
      _
    $region19: #{tpu_custom_call.1} parent=1 // pred_check_branch
      %54 = sbr.rel (0) target = $region21
    $region20: #{tpu_custom_call.1} parent=1 // pred_region
      %s56 = ssub.s32 384, 384
      %57 = vsyncadd [#allocation9], %s56
      %s58 = sshll.u32 [#allocation8], 4
      %s59 = int_to_ptr.vmem [resolvable:$true] %s58
      %64 = dma.hbm_to_vmem [thread:$0]  %s4, 384, %s59, [#allocation9], 64, 64, 4
    $region21: #{tpu_custom_call.1} parent=1 // pred_fallthru
      _
    // Predicated region
    $region22: #{tpu_custom_call.1} parent=1 // pred_check
      _
    $region23: #{tpu_custom_call.1} parent=1 // pred_check_branch
      %66 = sbr.rel (0) target = $region25
    $region24: #{tpu_custom_call.1} parent=1 // pred_region
      _
    $region25: #{tpu_custom_call.1} parent=1 // pred_fallthru
      _
    // Predicated region
    $region26: #{tpu_custom_call.1} parent=1 // pred_check
      _
    $region27: #{tpu_custom_call.1} parent=1 // pred_check_branch
      %68 = sbr.rel (0) target = $region29
    $region28: #{tpu_custom_call.1} parent=1 // pred_region
      %69 = dma.done [#allocation3], 256
    $region29: #{tpu_custom_call.1} parent=1 // pred_fallthru
      _
    // Predicated region
    $region30: #{tpu_custom_call.1} parent=1 // pred_check
      _
    $region31: #{tpu_custom_call.1} parent=1 // pred_check_branch
      %71 = sbr.rel (0) target = $region33
    $region32: #{tpu_custom_call.1} parent=1 // pred_region
      %72 = dma.done [#allocation6], 512
    $region33: #{tpu_custom_call.1} parent=1 // pred_fallthru
      _
    // Predicated region
    $region34: #{tpu_custom_call.1} parent=1 // pred_check
      _
    $region35: #{tpu_custom_call.1} parent=1 // pred_check_branch
      %74 = sbr.rel (0) target = $region37
    $region36: #{tpu_custom_call.1} parent=1 // pred_region
      %75 = dma.done [#allocation6], 256
    $region37: #{tpu_custom_call.1} parent=1 // pred_fallthru
      _
    // Predicated region
    $region38: #{tpu_custom_call.1} parent=1 // pred_check
      _
    $region39: #{tpu_custom_call.1} parent=1 // pred_check_branch
      %77 = sbr.rel (0) target = $region41
    $region40: #{tpu_custom_call.1} parent=1 // pred_region
      %78 = dma.done [#allocation9], 384
    $region41: #{tpu_custom_call.1} parent=1 // pred_fallthru
      _
    %v80 = vld [vmem:[#allocation2] sm:$0xf]
    %v81 = vld [vmem:[#allocation2 + $0x4] sm:$0xf]
    %v82 = vld [vmem:[#allocation2 + $0x8] sm:$0xf]
    %v83 = vld [vmem:[#allocation2 + $0xc] sm:$0xf]
    %v84 = vld [vmem:[#allocation5] sm:$0xff]
    %v85 = vld [vmem:[#allocation5 + $0x8] sm:$0xff]
    %v86 = vld [vmem:[#allocation5 + $0x10] sm:$0xff]
    %v87 = vld [vmem:[#allocation5 + $0x18] sm:$0xff]
    %v92 = vunpack.c.l.b16 %v80
    %v93 = vunpack.c.l.b16 %v81
    %v94 = vunpack.c.l.b16 %v82
    %v95 = vunpack.c.l.b16 %v83
    %v96 = vpack.c.b16 %v93, %v92
    %v97 = vpack.c.b16 %v95, %v94
    %v102 = vunpack.c.l.b16 %v84
    %v103 = vunpack.c.h.b16 %v84
    %v104 = vunpack.c.l.b16 %v85
    %v105 = vunpack.c.h.b16 %v85
    %v106 = vunpack.c.l.b16 %v86
    %v107 = vunpack.c.h.b16 %v86
    %v108 = vunpack.c.l.b16 %v87
    %v109 = vunpack.c.h.b16 %v87
    %v110 = vpack.c.b16 %v104, %v102
    %v111 = vpack.c.b16 %v105, %v103
    %v112 = vpack.c.b16 %v108, %v106
    %v113 = vpack.c.b16 %v109, %v107
    %vm118 = vcmask 261120
    %v120 = vsel %vm118, %v96, 0
    %v123 = vsel %vm118, %v97, 0
    %125 = vmatprep.subr.bf16.mxu0 0
    %126 = vmatpush1.bf16.msra.mxu0 0
    %127 = vmatprep.subr.bf16.mxu0 0
    %128 = vmatpush1.bf16.msra.mxu0 0
    %129 = vmatprep.subr.bf16.mxu0 0
    %130 = vmatpush1.bf16.msra.mxu0 0
    %131 = vmatprep.subr.bf16.mxu0 0
    %132 = vmatpush1.bf16.msra.mxu0 0
    %133 = vmatprep.subr.bf16.mxu0 0
    %134 = vmatpush1.bf16.msra.mxu0 0
    %135 = vmatprep.subr.bf16.mxu0 0
    %136 = vmatpush1.bf16.msra.mxu0 0
    %137 = vmatprep.subr.bf16.mxu0 %v113
    %138 = vmatpush1.bf16.msra.mxu0 %v112
    %139 = vmatprep.subr.bf16.mxu0 %v111
    %140 = vmatpush1.bf16.msra.mxu0 %v110
    %141 = vmatprep.subr.bf16.mxu0 0
    %142 = vmatpush2.bf16.msra.mxu0 0
    %143 = vmatprep.subr.bf16.mxu0 0
    %144 = vmatpush2.bf16.msra.mxu0 0
    %145 = vmatprep.subr.bf16.mxu0 0
    %146 = vmatpush2.bf16.msra.mxu0 0
    %147 = vmatprep.subr.bf16.mxu0 0
    %148 = vmatpush2.bf16.msra.mxu0 0
    %149 = vmatprep.subr.bf16.mxu0 0
    %150 = vmatpush2.bf16.msra.mxu0 0
    %151 = vmatprep.subr.bf16.mxu0 0
    %152 = vmatpush2.bf16.msra.mxu0 0
    %153 = vmatprep.subr.bf16.mxu0 0
    %154 = vmatpush2.bf16.msra.mxu0 0
    %155 = vmatprep.subr.bf16.mxu0 0
    %156 = vmatpush2.bf16.msra.mxu0 0
    %157 = vmatprep.mubr.bf16.mxu0 0
    %158 = vmatmul.mubr.bf16.gmra.mxu0 %v120
    %v159 = vpop.f32.mrf.mxu0
    %v160 = vadd.f32 0.0, %v159
    %v161 = vpop.f32.mrf.mxu0
    %v162 = vadd.f32 0.0, %v161
    %v163 = vpop.f32.mrf.mxu0
    %v164 = vadd.f32 0.0, %v163
    %v165 = vpop.f32.mrf.mxu0
    %v166 = vadd.f32 0.0, %v165
    %167 = vmatprep.mubr.bf16.mxu0 0
    %168 = vmatmul.mubr.bf16.gmra.mxu0 %v123
    %v169 = vpop.f32.mrf.mxu0
    %v170 = vadd.f32 0.0, %v169
    %v171 = vpop.f32.mrf.mxu0
    %v172 = vadd.f32 0.0, %v171
    %v173 = vpop.f32.mrf.mxu0
    %v174 = vadd.f32 0.0, %v173
    %v175 = vpop.f32.mrf.mxu0
    %v176 = vadd.f32 0.0, %v175
    %177 = vdwg.mxu0
    %182 = vrot.lane.b32.xlu0 %v160, 80
    %v183 = vpop.permute.xlu0 %182
    %184 = vrot.lane.b32.xlu0 %v164, 80
    %v185 = vpop.permute.xlu0 %184
    %186 = vrot.lane.b32.xlu0 %v170, 80
    %v187 = vpop.permute.xlu0 %186
    %188 = vrot.lane.b32.xlu0 %v174, 80
    %v189 = vpop.permute.xlu0 %188
    %v194 = vrot.slane %v183, 1
    %v195 = vrot.slane %v187, 1
    %v196 = vrot.slane %v185, 1
    %v197 = vrot.slane %v189, 1
    %v198 = vlaneseq
    %v199 = vshrl.u32 %v198, 7
    %vm200 = vcmp.lt.s32.totalorder %v199, 7
    %v201 = vsel %vm200, %v194, %v196
    %v202 = vsel %vm200, %v195, %v197
    %v203 = vsel %vm200, %v196, %v194
    %v204 = vsel %vm200, %v197, %v195
    %v205 = vadd.f32 %v160, %v201
    %v206 = vadd.f32 %v164, %v203
    %v207 = vadd.f32 %v170, %v202
    %v208 = vadd.f32 %v174, %v204
    %213 = vrot.lane.b32.xlu0 %v160, 32
    %v214 = vpop.permute.xlu0 %213
    %215 = vrot.lane.b32.xlu0 %v162, 32
    %v216 = vpop.permute.xlu0 %215
    %217 = vrot.lane.b32.xlu0 %v164, 32
    %v218 = vpop.permute.xlu0 %217
    %219 = vrot.lane.b32.xlu0 %v166, 32
    %v220 = vpop.permute.xlu0 %219
    %221 = vrot.lane.b32.xlu0 %v170, 32
    %v222 = vpop.permute.xlu0 %221
    %223 = vrot.lane.b32.xlu0 %v172, 32
    %v224 = vpop.permute.xlu0 %223
    %225 = vrot.lane.b32.xlu0 %v174, 32
    %v226 = vpop.permute.xlu0 %225
    %227 = vrot.lane.b32.xlu0 %v176, 32
    %v228 = vpop.permute.xlu0 %227
    %v229 = vsel %vm118, %v214, %v216
    %v230 = vsel %vm118, %v218, %v220
    %v231 = vsel %vm118, %v222, %v224
    %v232 = vsel %vm118, %v226, %v228
    %v237 = vrot.slane %v229, 2
    %v238 = vrot.slane %v231, 2
    %v239 = vrot.slane %v230, 2
    %v240 = vrot.slane %v232, 2
    %vm241 = vcmp.lt.s32.totalorder %v199, 6
    %v242 = vsel %vm241, %v237, %v239
    %v243 = vsel %vm241, %v238, %v240
    %v244 = vsel %vm241, %v239, %v237
    %v245 = vsel %vm241, %v240, %v238
    %v246 = vadd.f32 %v205, %v242
    %v247 = vadd.f32 %v206, %v244
    %v248 = vadd.f32 %v207, %v243
    %v249 = vadd.f32 %v208, %v245
    %250 = vrot.lane.b32.xlu0 %v162, 112
    %v251 = vpop.permute.xlu0 %250
    %252 = vrot.lane.b32.xlu0 %v166, 112
    %v253 = vpop.permute.xlu0 %252
    %254 = vrot.lane.b32.xlu0 %v172, 112
    %v255 = vpop.permute.xlu0 %254
    %256 = vrot.lane.b32.xlu0 %v176, 112
    %v257 = vpop.permute.xlu0 %256
    %v262 = vrot.slane %v251, 3
    %v263 = vrot.slane %v255, 3
    %v264 = vrot.slane %v253, 3
    %v265 = vrot.slane %v257, 3
    %vm266 = vcmp.lt.s32.totalorder %v199, 5
    %v267 = vsel %vm266, %v262, %v264
    %v268 = vsel %vm266, %v263, %v265
    %v269 = vsel %vm266, %v264, %v262
    %v270 = vsel %vm266, %v265, %v263
    %v271 = vadd.f32 %v246, %v267
    %v272 = vadd.f32 %v247, %v269
    %v273 = vadd.f32 %v248, %v268
    %v274 = vadd.f32 %v249, %v270
    %275 = vrot.lane.b32.xlu0 %v162, 64
    %v276 = vpop.permute.xlu0 %275
    %277 = vrot.lane.b32.xlu0 %v166, 64
    %v278 = vpop.permute.xlu0 %277
    %279 = vrot.lane.b32.xlu0 %v172, 64
    %v280 = vpop.permute.xlu0 %279
    %281 = vrot.lane.b32.xlu0 %v176, 64
    %v282 = vpop.permute.xlu0 %281
    %v287 = vrot.slane %v276, 4
    %v288 = vrot.slane %v280, 4
    %v289 = vrot.slane %v278, 4
    %v290 = vrot.slane %v282, 4
    %vm291 = vcmp.lt.s32.totalorder %v199, 4
    %v292 = vsel %vm291, %v287, %v289
    %v293 = vsel %vm291, %v288, %v290
    %v294 = vsel %vm291, %v289, %v287
    %v295 = vsel %vm291, %v290, %v288
    %v296 = vadd.f32 %v271, %v292
    %v297 = vadd.f32 %v272, %v294
    %v298 = vadd.f32 %v273, %v293
    %v299 = vadd.f32 %v274, %v295
    %v300 = vld [vmem:[#allocation7] sm:$0xff]
    %v301 = vld [vmem:[#allocation7 + $0x8] sm:$0xff]
    %v302 = vadd.f32 %v296, %v300
    %v303 = vadd.f32 %v297, %v301
    %v304 = vadd.f32 %v298, %v300
    %v305 = vadd.f32 %v299, %v301
    %vm306 = vcmask 392192
    %v307 = vsel %vm306, %v302, -inf
    %v308 = vsel %vm306, %v303, -inf
    %v309 = vmax.f32 %v307, %v308
    %v310 = vrot.slane %v309, 4
    %v311 = vmax.f32 %v309, %v310
    %v312 = vrot.slane %v311, 2
    %v313 = vmax.f32 %v311, %v312
    %v314 = vrot.slane %v313, 1
    %v315 = vmax.f32 %v313, %v314
    %v316 = vsel %vm306, %v304, -inf
    %v317 = vsel %vm306, %v305, -inf
    %v318 = vmax.f32 %v316, %v317
    %v319 = vrot.slane %v318, 4
    %v320 = vmax.f32 %v318, %v319
    %v321 = vrot.slane %v320, 2
    %v322 = vmax.f32 %v320, %v321
    %v323 = vrot.slane %v322, 1
    %v324 = vmax.f32 %v322, %v323
    %v325 = vld [vmem:[%s2] sm:$0x1]
    %v327 = vlaneseq
    %v328 = vshrl.u32 %v327, 7
    %v329 = vsub.s32 0, %v328
    %v330 = vrot.slane %v325, %v329
    %v332 = vadd.f32 %v315, %v330
    %v333 = vadd.f32 %v324, %v330
    %v334 = vmax.f32 %v332, 0.0
    %v335 = vmax.f32 %v333, 0.0
    %v336 = vpack.c.bf16 %v334, %v334
    %v337 = vpack.c.bf16 %v335, %v335
    %v338 = vld [vmem:[#allocation8] sm:$0xf]
    %v339 = vld [vmem:[#allocation8 + $0x4] sm:$0xf]
    %v340 = vld [vmem:[#allocation8 + $0x8] sm:$0xf]
    %v341 = vld [vmem:[#allocation8 + $0xc] sm:$0xf]
    %v342 = vld [vmem:[#allocation8 + $0x10] sm:$0xf]
    %v343 = vld [vmem:[#allocation8 + $0x14] sm:$0xf]
    %v344 = vld [vmem:[%s5] sm:$0x1]
    %v346 = vlaneseq
    %v347 = vshrl.u32 %v346, 7
    %v348 = vsub.s32 0, %v347
    %v349 = vrot.slane %v344, %v348
    %v353 = vunpack.c.l.b16 %v336
    %v354 = vunpack.c.l.b16 %v337
    %v355 = vrot.slane %v354, 7
    %vm356 = vcmask 1041409
    %v357 = vsel %vm356, %v355, %v353
    %v358 = vpack.c.b16 %v357, %v357
    %v365 = vunpack.c.l.b16 %v338
    %v366 = vunpack.c.l.b16 %v339
    %v367 = vunpack.c.l.b16 %v340
    %v368 = vunpack.c.l.b16 %v341
    %v369 = vunpack.c.l.b16 %v342
    %v370 = vunpack.c.l.b16 %v343
    %v371 = vpack.c.b16 %v366, %v365
    %v372 = vpack.c.b16 %v368, %v367
    %v373 = vpack.c.b16 %v370, %v369
    %v378 = vsel %vm306, %v358, 0
    %380 = vmatprep.subr.bf16.mxu0 0
    %381 = vmatpush1.bf16.msra.mxu0 0
    %382 = vmatprep.subr.bf16.mxu0 0
    %383 = vmatpush1.bf16.msra.mxu0 0
    %384 = vmatprep.subr.bf16.mxu0 0
    %385 = vmatpush1.bf16.msra.mxu0 0
    %386 = vmatprep.subr.bf16.mxu0 0
    %387 = vmatpush1.bf16.msra.mxu0 0
    %388 = vmatprep.subr.bf16.mxu0 0
    %389 = vmatpush1.bf16.msra.mxu0 0
    %390 = vmatprep.subr.bf16.mxu0 0
    %391 = vmatpush1.bf16.msra.mxu0 %v373
    %392 = vmatprep.subr.bf16.mxu0 0
    %393 = vmatpush1.bf16.msra.mxu0 %v372
    %394 = vmatprep.subr.bf16.mxu0 0
    %395 = vmatpush1.bf16.msra.mxu0 %v371
    %396 = vmatprep.subr.bf16.mxu0 0
    %397 = vmatpush2.bf16.msra.mxu0 0
    %398 = vmatprep.subr.bf16.mxu0 0
    %399 = vmatpush2.bf16.msra.mxu0 0
    %400 = vmatprep.subr.bf16.mxu0 0
    %401 = vmatpush2.bf16.msra.mxu0 0
    %402 = vmatprep.subr.bf16.mxu0 0
    %403 = vmatpush2.bf16.msra.mxu0 0
    %404 = vmatprep.subr.bf16.mxu0 0
    %405 = vmatpush2.bf16.msra.mxu0 0
    %406 = vmatprep.subr.bf16.mxu0 0
    %407 = vmatpush2.bf16.msra.mxu0 0
    %408 = vmatprep.subr.bf16.mxu0 0
    %409 = vmatpush2.bf16.msra.mxu0 0
    %410 = vmatprep.subr.bf16.mxu0 0
    %411 = vmatpush2.bf16.msra.mxu0 0
    %412 = vmatprep.mubr.bf16.mxu0 0
    %413 = vmatmul.mubr.bf16.gmra.mxu0 %v378
    %v414 = vpop.f32.mrf.mxu0
    %v415 = vadd.f32 %v349, %v414
    %v416 = vpop.f32.mrf.mxu0
    %v417 = vpop.f32.mrf.mxu0
    %v418 = vpop.f32.mrf.mxu0
    %419 = vdwg.mxu0
    %420 = vst [vmem:[#allocation10] sm:$0x3] %v415
    // Predicated region
    $region42: #{tpu_custom_call.1} parent=1 // pred_check
      _
    $region43: #{tpu_custom_call.1} parent=1 // pred_check_branch
      %422 = sbr.rel (0) target = $region45
    $region44: #{tpu_custom_call.1} parent=1 // pred_region
      %s424 = ssub.s32 32, 32
      %425 = vsyncadd [#allocation4], %s424
      %s427 = sshll.u32 [#allocation10], 4
      %s428 = int_to_ptr.vmem [resolvable:$true] %s427
      %430 = dma.vmem_to_hbm [thread:$0]  %s428, 32, %s6, [#allocation4]
    $region45: #{tpu_custom_call.1} parent=1 // pred_fallthru
      _
    // Predicated region
    $region46: #{tpu_custom_call.1} parent=1 // pred_check
      _
    $region47: #{tpu_custom_call.1} parent=1 // pred_check_branch
      %432 = sbr.rel (0) target = $region49
    $region48: #{tpu_custom_call.1} parent=1 // pred_region
      %433 = dma.done [#allocation4], 32
    $region49: #{tpu_custom_call.1} parent=1 // pred_fallthru
      _
    %434 = vsyncpa [#allocation3], 1
    %435 = vsyncpa [#allocation6], 1
    %436 = vsyncpa [#allocation9], 1
    %437 = vsyncpa [#allocation4], 1

</llo_original>
